<compile_context>
chip_gen: v6e
topology: v6e:2x2x1
jax: 0.10.0
libtpu: 0.0.40
codegen_flags: <defaults>
</compile_context>

<pallas_src>
import jax
import jax.numpy as jnp
from jax.experimental import pallas as pl
from jax.experimental.pallas import tpu as pltpu


# Per-buffer tile target. in + out specs, each double-buffered -> 4 live
# buffers, so 8 MiB/buffer keeps total VMEM ~32 MiB (fits v7x's 64 MiB/TC
# with headroom, and is far inside v5e/v6e's 128 MiB).
_TARGET_TILE_BYTES = 8 << 20
_VMEM_HEADROOM_BYTES = 2 << 20


def _copy_kernel(x_ref, o_ref):
    # Pure pass-through of the current tile.
    o_ref[...] = x_ref[...]


def _lane_dense_view(x):
    """Reshape x to (rows, width) with width a multiple of 128 when possible.

    Falls back to a plain 2-D view of the original trailing dim if the total
    element count has no 128-multiple divisor (copy stays correct, just
    lane-sparse).
    """
    total = x.size
    for width in (4096, 2048, 1024, 512, 256, 128):
        if width <= total and total % width == 0:
            return x.reshape(total // width, width)
    if x.ndim == 2:
        return x
    lead = 1
    for d in x.shape[:-1]:
        lead *= d
    return x.reshape(lead, x.shape[-1])


def _pallas_identity_copy(x):
    """HBM->VMEM->HBM pass-through copy with lane-dense, multi-MiB tiles."""
    orig_shape = x.shape
    x2 = _lane_dense_view(x)
    rows, width = x2.shape
    itemsize = jnp.dtype(x.dtype).itemsize
    row_bytes = max(width * itemsize, 1)

    tile_rows = max(1, _TARGET_TILE_BYTES // row_bytes)
    if tile_rows >= rows:
        # Single block equal to the full array dims — always a legal block shape.
        tile_rows = rows
        grid = (1,)
    else:
        # Sublane-align for any dtype packing; ragged final block is safe for a copy.
        tile_rows = max(32, (tile_rows // 32) * 32)
        grid = (pl.cdiv(rows, tile_rows),)

    tile_bytes = tile_rows * row_bytes
    # 4 live buffers (in/out, double-buffered) + headroom; cap at 48 MiB so the
    # same sizing is valid on v7x (64 MiB VMEM per TC) and v5e/v6e (128 MiB).
    vmem_limit = min(max(4 * tile_bytes + _VMEM_HEADROOM_BYTES, 16 << 20), 48 << 20)

    out = pl.pallas_call(
        _copy_kernel,
        out_shape=jax.ShapeDtypeStruct((rows, width), x.dtype),
        grid_spec=pltpu.PrefetchScalarGridSpec(
            num_scalar_prefetch=0,
            grid=grid,
            in_specs=[pl.BlockSpec((tile_rows, width), lambda i: (i, 0))],
            out_specs=pl.BlockSpec((tile_rows, width), lambda i: (i, 0)),
        ),
        compiler_params=pltpu.CompilerParams(
            dimension_semantics=("parallel",),
            vmem_limit_bytes=vmem_limit,
        ),
    )(x2)
    return out.reshape(orig_shape)


def identity_inter_set_layer(inputs, *, materialize=False):
    """Pallas/JAX implementation of IdentityInterSetLayer.forward.

    Args:
      inputs: tuple/list; element 0 is the point-feature array x (e.g. (N, C)).
        Remaining elements (xyz coords, offsets) are ignored, matching the
        PyTorch module.
      materialize: if False (default), return inputs[0] directly — an identity
        requires no data movement. If True, run the Pallas pass-through copy
        kernel (useful only when a kernel boundary / fresh buffer is mandated).

    Returns:
      Array identical to inputs[0] (same shape, dtype, values).
    """
    x = inputs[0]
    if not materialize:
        return x
    return _pallas_identity_copy(x)


if __name__ == "__main__":
    key = jax.random.PRNGKey(0)
    k_x, k_p, k_y = jax.random.split(key, 3)

    # Module hyper-params only affect shapes of x; in_planes/share_planes/
    # nsample/use_xyz are stored but unused in forward.
    in_planes = 32
    n_points = 200  # deliberately NOT a multiple of 64 — exercises the flexible tiling

    x = jax.random.normal(k_x, (n_points, in_planes), dtype=jnp.float32)
    # Extra elements of the PointMixer "input" tuple (xyz coords, offsets) — unused.
    p = jax.random.normal(k_p, (n_points, 3), dtype=jnp.float32)
    o = jnp.array([n_points], dtype=jnp.int32)
    inputs = (x, p, o)

    # Fast path (default): true zero-cost identity.
    out_fast = identity_inter_set_layer(inputs)
    assert out_fast is x

    # Kernel path: lane-dense Pallas copy (6400 elems -> (25, 256) slab).
    out_kernel = jax.block_until_ready(
        identity_inter_set_layer(inputs, materialize=True))
    assert out_kernel.shape == x.shape and out_kernel.dtype == x.dtype
    assert bool(jnp.array_equal(out_kernel, x))

    # Lane-sparse fallback case (total elements not divisible by 128).
    y = jax.random.normal(k_y, (130, 3), dtype=jnp.float32)
    out_y = jax.block_until_ready(
        identity_inter_set_layer((y,), materialize=True))
    assert bool(jnp.array_equal(out_y, y))

    print("KERNEL_OK")
</pallas_src>

<mosaic_0001>
module attributes {stable_mosaic.version = 11 : i64} {
  func.func @_copy_kernel(%arg0: i32, %arg1: memref<25x256xf32, #tpu.memory_space<vmem>>, %arg2: memref<25x256xf32, #tpu.memory_space<vmem>>) attributes {dimension_semantics = [#tpu.dimension_semantics<parallel>], iteration_bounds = array<i64: 1>, scalar_prefetch = 0 : i64, scratch_operands = 0 : i64, tpu.core_type = #tpu.core_type<tc>, window_params = [{transform_indices = @transform_0, window_bounds = array<i64: 25, 256>}, {transform_indices = @transform_1, window_bounds = array<i64: 25, 256>}]} {
    %c0 = arith.constant 0 : index
    %c0_0 = arith.constant 0 : index
    %0 = vector.load %arg1[%c0, %c0_0] : memref<25x256xf32, #tpu.memory_space<vmem>>, vector<25x256xf32>
    %c0_1 = arith.constant 0 : index
    %c0_2 = arith.constant 0 : index
    %1 = vector.load %arg2[%c0_1, %c0_2] : memref<25x256xf32, #tpu.memory_space<vmem>>, vector<25x256xf32>
    tpu.vector_store %arg2[%c0_1, %c0_2], %0 {strides = array<i32>} : memref<25x256xf32, #tpu.memory_space<vmem>>, vector<25x256xf32>,
    return
  }
  func.func @transform_0(%arg0: i32) -> (i32, i32) {
    %c0_i32 = arith.constant 0 : i32
    %c0_i32_0 = arith.constant 0 : i32
    return %arg0, %c0_i32 : i32, i32
  }
  func.func @transform_1(%arg0: i32) -> (i32, i32) {
    %c0_i32 = arith.constant 0 : i32
    %c0_i32_0 = arith.constant 0 : i32
    return %arg0, %c0_i32 : i32, i32
  }
}

</mosaic_0001>

<llo_original>
// kernel: tpu_custom_call.1
$region0: #{tpu_custom_call.1}
  #allocation0 [shape = 'u32[]', space=smem, size = 0x4, offset = 0x4, fixed_abs, tag = 'smem constant byte address 0x4 - core index']
  #allocation1 [shape = 'u32[144,128]{1,0:T(1,128)}', space=vmem, size = 0x12000, scoped, tag = 'internal scratch']
  %s0 = inlined_call_operand.hbm [shape: f32[25,256], index: 0, kind: input, shape index: {}]
  %s1 = inlined_call_operand.hbm [shape: f32[25,256], index: 1, kind: output, shape index: {}]
  %s2 = sld [smem:[#allocation0]]
  $region18: #{tpu_custom_call.1} parent=0
    _
  %s4 = ssub.s32 1, %s2
  %s5 = scalar_select 0, %s4, %s2
  $region1: #{tpu_custom_call.1} parent=0
    #allocation2 [shape = 'u8[32768]{0}', space=vmem, size = 0x8000, scoped, tag = 'input window, operand 0, single buffered']
    #allocation3 [shape = 's32[1]{0}', space=sflag, size = 0x4, scoped, tag = 'scoped memory for tpu_custom_call.1']
    #allocation4 [shape = 's32[1]{0}', space=sflag, size = 0x4, scoped, tag = 'scoped memory for tpu_custom_call.1']
    #allocation5 [shape = 'u8[32768]{0}', space=vmem, size = 0x8000, scoped, tag = 'output window, operand 0, single buffered']
    %6 = vsyncpa [#allocation3], 0
    %7 = vsyncpa [#allocation4], 0
    // Predicated region
    $region2: #{tpu_custom_call.1} parent=1 // pred_check
      _
    $region3: #{tpu_custom_call.1} parent=1 // pred_check_branch
      %9 = sbr.rel (0) target = $region5
    $region4: #{tpu_custom_call.1} parent=1 // pred_region
      %s11 = ssub.s32 1024, 1024
      %12 = vsyncadd [#allocation3], %s11
      %s13 = sshll.u32 [#allocation2], 4
      %s14 = int_to_ptr.vmem [resolvable:$true] %s13
      %19 = dma.hbm_to_vmem [thread:$0]  %s0, 1024, %s14, [#allocation3], 256, 256, 16
    $region5: #{tpu_custom_call.1} parent=1 // pred_fallthru
      _
    // Predicated region
    $region6: #{tpu_custom_call.1} parent=1 // pred_check
      _
    $region7: #{tpu_custom_call.1} parent=1 // pred_check_branch
      %21 = sbr.rel (0) target = $region9
    $region8: #{tpu_custom_call.1} parent=1 // pred_region
      %22 = dma.done [#allocation3], 1024
    $region9: #{tpu_custom_call.1} parent=1 // pred_fallthru
      _
    %v23 = vld [vmem:[#allocation2] sm:$0xff]
    %v24 = vld [vmem:[#allocation2 + $0x8] sm:$0xff]
    %v25 = vld [vmem:[#allocation2 + $0x10] sm:$0xff]
    %v26 = vld [vmem:[#allocation2 + $0x18] sm:$0xff]
    %v27 = vld [vmem:[#allocation2 + $0x20] sm:$0xff]
    %v28 = vld [vmem:[#allocation2 + $0x28] sm:$0xff]
    %v29 = vld [vmem:[#allocation2 + $0x30] sm:$0x1]
    %v30 = vld [vmem:[#allocation2 + $0x38] sm:$0x1]
    %31 = vst [vmem:[#allocation5] sm:$0xff] %v23
    %32 = vst [vmem:[#allocation5 + $0x8] sm:$0xff] %v24
    %33 = vst [vmem:[#allocation5 + $0x10] sm:$0xff] %v25
    %34 = vst [vmem:[#allocation5 + $0x18] sm:$0xff] %v26
    %35 = vst [vmem:[#allocation5 + $0x20] sm:$0xff] %v27
    %36 = vst [vmem:[#allocation5 + $0x28] sm:$0xff] %v28
    %37 = vst [vmem:[#allocation5 + $0x30] sm:$0x1] %v29
    %38 = vst [vmem:[#allocation5 + $0x38] sm:$0x1] %v30
    // Predicated region
    $region10: #{tpu_custom_call.1} parent=1 // pred_check
      _
    $region11: #{tpu_custom_call.1} parent=1 // pred_check_branch
      %40 = sbr.rel (0) target = $region13
    $region12: #{tpu_custom_call.1} parent=1 // pred_region
      %s42 = ssub.s32 1024, 1024
      %43 = vsyncadd [#allocation4], %s42
      %s44 = sshll.u32 [#allocation5], 4
      %s45 = int_to_ptr.vmem [resolvable:$true] %s44
      %50 = dma.vmem_to_hbm [thread:$0]  %s45, 1024, %s1, [#allocation4], 256, 256, 16
    $region13: #{tpu_custom_call.1} parent=1 // pred_fallthru
      _
    // Predicated region
    $region14: #{tpu_custom_call.1} parent=1 // pred_check
      _
    $region15: #{tpu_custom_call.1} parent=1 // pred_check_branch
      %52 = sbr.rel (0) target = $region17
    $region16: #{tpu_custom_call.1} parent=1 // pred_region
      %53 = dma.done [#allocation4], 1024
    $region17: #{tpu_custom_call.1} parent=1 // pred_fallthru
      _
    %54 = vsyncpa [#allocation3], 1
    %55 = vsyncpa [#allocation4], 1

</llo_original>
